<compile_context>
chip_gen: v5e
topology: v5e:2x2
jax: 0.10.0
libtpu: 0.0.40
codegen_flags: <defaults>
</compile_context>

<pallas_src>
from functools import partial

import jax
import jax.numpy as jnp
from jax import lax
from jax.experimental import pallas as pl
from jax.experimental.pallas import tpu as pltpu

BN_EPS = 1e-5

# dot_general dimension numbers: contract the last dim of both operands
# ("NT" matmul, same pattern as the TPU flash-attention q.k^T).
_NT_DIMS = (((1,), (1,)), ((), ()))


def _round_up(v, m):
    return (v + m - 1) // m * m


def _feature_selection_kernel(x_ref, w1_ref, w2_ref, c_ref, o_ref):
    # x_ref : (tn, F)          f32   (cast to bf16 at the MXU input)
    # w1_ref: (F, H)           bf16
    # w2_ref: (H, 64)          f32   (eval-mode BN folded in)
    # c_ref : (4, max(H,64))   f32   rows: b1 | b2(folded) | w3 | b3
    # o_ref : (1, tn)          f32   lane-dense per-row outputs
    hdim = w1_ref.shape[1]

    # Linear(F -> H): f32 tile cast to bf16 right before the dot (cheap VPU op
    # hidden under the matmul); f32 MXU accumulation.
    h = jnp.dot(x_ref[...].astype(jnp.bfloat16), w1_ref[...],
                preferred_element_type=jnp.float32)
    h = h + c_ref[0:1, :hdim]                      # + b1
    h = h * jax.nn.sigmoid(h)                      # SiLU (EUP sigmoid + VPU mul)

    # BatchNorm1d (eval, running stats) is folded into w2/b2 by prepare_params.
    # Dropout (eval mode) = identity.

    # Linear(H -> 64) + ReLU.  f32 operands: the BN-scaled w2 keeps full
    # precision and the weight is tiny (MXU utilization is a non-goal here).
    h2 = jnp.dot(h, w2_ref[...], preferred_element_type=jnp.float32)
    h2 = jnp.maximum(h2 + c_ref[1:2, :64], 0.0)    # + b2, ReLU

    # Linear(64 -> 1), emitted lane-dense: w3[8,64] . h2[tn,64]^T -> (8, tn);
    # w3 is replicated to the native 8-sublane granule and row 0 is the result.
    # The NT matmul puts the per-row outputs directly in lane-major layout.
    w3 = jnp.broadcast_to(c_ref[2:3, :64], (8, 64))
    out = lax.dot_general(w3, h2, _NT_DIMS, preferred_element_type=jnp.float32)
    o_ref[...] = (out[0:1, :] + c_ref[3:4, 0:1]).astype(o_ref.dtype)   # + b3


def prepare_params(params):
    """One-time (per parameter update) folding/packing, hoisted out of the
    per-call path:
      * eval-mode BatchNorm (which follows SiLU) folded into the *second*
        Linear:  BN(y) @ w2 + b2 = y @ (scale*w2) + (shift @ w2 + b2),
      * w1 cast to bf16 (MXU operand),
      * b1, b2, w3, b3 packed into a single small f32 operand (one DMA)."""
    f, h = params["w1"].shape
    scale = params["gamma"] * lax.rsqrt(params["running_var"] + BN_EPS)   # (1,H)
    shift = params["beta"] - params["running_mean"] * scale               # (1,H)
    w2_fold = params["w2"] * scale.reshape(h, 1)                          # (H,64) f32
    b2_fold = shift @ params["w2"] + params["b2"]                         # (1,64)

    cw = max(h, 64)
    consts = jnp.zeros((4, cw), jnp.float32)
    consts = consts.at[0, :h].set(params["b1"][0])        # b1
    consts = consts.at[1, :64].set(b2_fold[0])            # b2 (BN folded)
    consts = consts.at[2, :64].set(params["w3"][:, 0])    # w3 row
    consts = consts.at[3, 0].set(params["b3"][0, 0])      # b3
    return {
        "w1": params["w1"].astype(jnp.bfloat16),   # (F, H) bf16
        "w2": w2_fold,                             # (H, 64) f32 (precision note above)
        "consts": consts,                          # (4, max(H, 64)) f32
    }


@partial(jax.jit, static_argnames=("tile_n",))
def feature_selection(x, prep, *, tile_n=4096):
    """x: (N, input_dim) f32.  prep: output of prepare_params()."""
    n, f = x.shape
    w1, w2, consts = prep["w1"], prep["w2"], prep["consts"]
    hdim = w2.shape[0]
    cw = consts.shape[1]

    # ---- Batch tile selection.
    #  * As large as possible: per-grid-step overhead (~0.35us) dominates small
    #    tiles, and an x tile is only tn*F*4 bytes so VMEM is not the limit.
    #  * >=2 grid steps for big batches so the "parallel" axis shards across
    #    v7x's two TensorCores (irrelevant on v5e/v6e, single TC).
    #  * Multiples of 16 (bf16 sublane packing) / 128 (lane-aligned out block)
    #    when the grid is ragged; a single full-array block otherwise.
    tn = min(tile_n, _round_up(n, 16))
    if n >= 1024:
        tn = min(tn, _round_up(pl.cdiv(n, 2), 128))
    if tn < n:
        tn = _round_up(tn, 128)
    if tn >= n:
        tn = n
    num_tiles = pl.cdiv(n, tn)
    t_total = num_tiles * tn

    const = lambda i: (0, 0)   # weights / packed biases stay resident across the grid

    flops = 2 * t_total * (f * hdim + hdim * 64 + 8 * 64)
    bytes_accessed = (n * f * 4                 # x (f32, single HBM pass)
                      + f * hdim * 2            # w1 (bf16)
                      + hdim * 64 * 4           # w2 (f32)
                      + 4 * cw * 4              # packed consts
                      + t_total * 4)            # lane-dense output

    out = pl.pallas_call(
        _feature_selection_kernel,
        out_shape=jax.ShapeDtypeStruct((1, t_total), jnp.float32),
        grid=(num_tiles,),
        in_specs=[
            pl.BlockSpec((tn, f), lambda i: (i, 0)),  # x tile (f32; cast in-kernel)
            pl.BlockSpec((f, hdim), const),           # w1 (bf16)
            pl.BlockSpec((hdim, 64), const),          # w2 (f32, BN folded)
            pl.BlockSpec((4, cw), const),             # packed b1/b2/w3/b3
        ],
        out_specs=pl.BlockSpec((1, tn), lambda i: (0, i)),   # lane-dense rows
        compiler_params=pltpu.CompilerParams(
            dimension_semantics=("parallel",)),
        # TODO(synk): for production-size layers on v7x (64 MiB VMEM),
        # single-buffer the constant-index weights (pipeline_mode=pl.Buffered(1))
        # and/or raise vmem_limit_bytes; unnecessary at these small shapes.
        cost_estimate=pl.CostEstimate(
            flops=flops,
            transcendentals=t_total * hdim,
            bytes_accessed=bytes_accessed),
    )(x, w1, w2, consts)

    # Lanes >= n of the edge block were computed from out-of-bounds (garbage)
    # rows; rows are independent, so simply slice them off.
    return jnp.reshape(out[0, :n], (n, 1))


def init_params(key, input_dim, num_hiddens):
    """Deterministic init mimicking PyTorch defaults (uniform +-1/sqrt(fan_in))."""
    ks = jax.random.split(key, 6)

    def lin_init(kw, kb, fan_in, fan_out):
        bound = 1.0 / jnp.sqrt(jnp.float32(fan_in))
        w = jax.random.uniform(kw, (fan_in, fan_out), jnp.float32, -bound, bound)
        b = jax.random.uniform(kb, (1, fan_out), jnp.float32, -bound, bound)
        return w, b

    w1, b1 = lin_init(ks[0], ks[1], input_dim, num_hiddens)
    w2, b2 = lin_init(ks[2], ks[3], num_hiddens, 64)
    w3, b3 = lin_init(ks[4], ks[5], 64, 1)

    return {
        "w1": w1, "b1": b1,
        "gamma": jnp.ones((1, num_hiddens), jnp.float32),
        "beta": jnp.zeros((1, num_hiddens), jnp.float32),
        "running_mean": jnp.zeros((1, num_hiddens), jnp.float32),
        "running_var": jnp.ones((1, num_hiddens), jnp.float32),
        "w2": w2, "b2": b2,
        "w3": w3, "b3": b3,
    }


def feature_selection_ref(x, p):
    """Pure-JAX f32 reference matching the original module (eval mode)."""
    h = x @ p["w1"] + p["b1"]
    h = h * jax.nn.sigmoid(h)
    h = (h - p["running_mean"]) * lax.rsqrt(p["running_var"] + BN_EPS) \
        * p["gamma"] + p["beta"]
    h2 = jnp.maximum(h @ p["w2"] + p["b2"], 0.0)
    return h2 @ p["w3"] + p["b3"]


if __name__ == "__main__":
    key = jax.random.PRNGKey(0)
    k_x, k_p, k_x2 = jax.random.split(key, 3)

    batch, input_dim, num_hiddens = 8, 32, 32
    x = jax.random.normal(k_x, (batch, input_dim), jnp.float32)
    params = init_params(k_p, input_dim, num_hiddens)

    # One-time fold/pack (hoisted out of the per-call path).
    prep = prepare_params(params)

    out = jax.block_until_ready(feature_selection(x, prep))
    ref = feature_selection_ref(x, params)
    assert out.shape == (batch, 1), out.shape
    # bf16 operands on the first matmul (f32 accumulation) -> relaxed tolerance.
    assert jnp.allclose(out, ref, atol=5e-2, rtol=5e-2), \
        f"max abs err {jnp.max(jnp.abs(out - ref))}"

    # Exercise the multi-tile ragged grid (N not a multiple of the tile):
    # edge-block rows past N are computed on garbage and sliced off.
    batch2 = 300
    x2 = jax.random.normal(k_x2, (batch2, input_dim), jnp.float32)
    out2 = jax.block_until_ready(feature_selection(x2, prep, tile_n=128))
    ref2 = feature_selection_ref(x2, params)
    assert out2.shape == (batch2, 1), out2.shape
    assert jnp.allclose(out2, ref2, atol=5e-2, rtol=5e-2), \
        f"max abs err {jnp.max(jnp.abs(out2 - ref2))}"

    print("KERNEL_OK")
</pallas_src>

<mosaic_0001>
module attributes {stable_mosaic.version = 11 : i64} {
  func.func @_feature_selection_kernel(%arg0: i32, %arg1: memref<8x32xf32, #tpu.memory_space<vmem>>, %arg2: memref<32x32xbf16, #tpu.memory_space<vmem>>, %arg3: memref<32x64xf32, #tpu.memory_space<vmem>>, %arg4: memref<4x64xf32, #tpu.memory_space<vmem>>, %arg5: memref<1x8xf32, #tpu.memory_space<vmem>>) attributes {dimension_semantics = [#tpu.dimension_semantics<parallel>], iteration_bounds = array<i64: 1>, scalar_prefetch = 0 : i64, scratch_operands = 0 : i64, tpu.core_type = #tpu.core_type<tc>, window_params = [{transform_indices = @transform_0, window_bounds = array<i64: 8, 32>}, {pipeline_mode = #tpu.pipeline_mode<synchronous>, transform_indices = @transform_1, window_bounds = array<i64: 32, 32>}, {pipeline_mode = #tpu.pipeline_mode<synchronous>, transform_indices = @transform_2, window_bounds = array<i64: 32, 64>}, {pipeline_mode = #tpu.pipeline_mode<synchronous>, transform_indices = @transform_3, window_bounds = array<i64: 4, 64>}, {transform_indices = @transform_4, window_bounds = array<i64: 1, 8>}]} {
    %c0 = arith.constant 0 : index
    %c0_0 = arith.constant 0 : index
    %0 = vector.load %arg1[%c0, %c0_0] : memref<8x32xf32, #tpu.memory_space<vmem>>, vector<8x32xf32>
    %1 = arith.truncf %0 : vector<8x32xf32> to vector<8x32xbf16>
    %c0_1 = arith.constant 0 : index
    %c0_2 = arith.constant 0 : index
    %2 = vector.load %arg2[%c0_1, %c0_2] : memref<32x32xbf16, #tpu.memory_space<vmem>>, vector<32x32xbf16>
    %cst = arith.constant dense<0.000000e+00> : vector<8x32xf32>
    %3 = tpu.matmul %1, %2, %cst {dimension_numbers = #tpu.dot_dimension_numbers<[1], [0], [0], [1], [0, 0, 1, 1], [], []>} : vector<8x32xbf16>, vector<32x32xbf16>, vector<8x32xf32> -> vector<8x32xf32>
    %c0_3 = arith.constant 0 : index
    %c0_4 = arith.constant 0 : index
    %4 = vector.load %arg4[%c0_3, %c0_4] : memref<4x64xf32, #tpu.memory_space<vmem>>, vector<1x32xf32>
    %5 = vector.broadcast %4 : vector<1x32xf32> to vector<8x32xf32>
    %6 = arith.addf %3, %5 : vector<8x32xf32>
    %7 = arith.negf %6 : vector<8x32xf32>
    %8 = math.exp %7 : vector<8x32xf32>
    %cst_5 = arith.constant 1.000000e+00 : f32
    %9 = vector.broadcast %cst_5 : f32 to vector<8x32xf32>
    %10 = arith.addf %9, %8 : vector<8x32xf32>
    %11 = arith.divf %9, %10 : vector<8x32xf32>
    %12 = arith.mulf %6, %11 : vector<8x32xf32>
    %c0_6 = arith.constant 0 : index
    %c0_7 = arith.constant 0 : index
    %13 = vector.load %arg3[%c0_6, %c0_7] : memref<32x64xf32, #tpu.memory_space<vmem>>, vector<32x64xf32>
    %cst_8 = arith.constant dense<0.000000e+00> : vector<8x64xf32>
    %14 = tpu.matmul %12, %13, %cst_8 {dimension_numbers = #tpu.dot_dimension_numbers<[1], [0], [0], [1], [0, 0, 1, 1], [], []>} : vector<8x32xf32>, vector<32x64xf32>, vector<8x64xf32> -> vector<8x64xf32>
    %c1 = arith.constant 1 : index
    %c0_9 = arith.constant 0 : index
    %15 = vector.load %arg4[%c1, %c0_9] : memref<4x64xf32, #tpu.memory_space<vmem>>, vector<1x64xf32>
    %16 = vector.broadcast %15 : vector<1x64xf32> to vector<8x64xf32>
    %17 = arith.addf %14, %16 : vector<8x64xf32>
    %cst_10 = arith.constant 0.000000e+00 : f32
    %18 = vector.broadcast %cst_10 : f32 to vector<8x64xf32>
    %19 = arith.maximumf %17, %18 : vector<8x64xf32>
    %c2 = arith.constant 2 : index
    %c0_11 = arith.constant 0 : index
    %20 = vector.load %arg4[%c2, %c0_11] : memref<4x64xf32, #tpu.memory_space<vmem>>, vector<1x64xf32>
    %21 = vector.shape_cast %20 : vector<1x64xf32> to vector<1x64xf32>
    %22 = vector.broadcast %21 : vector<1x64xf32> to vector<8x64xf32>
    %cst_12 = arith.constant dense<0.000000e+00> : vector<8x8xf32>
    %23 = tpu.matmul %22, %19, %cst_12 {dimension_numbers = #tpu.dot_dimension_numbers<[1], [1], [0], [0], [0, 0, 1, 0], [], []>} : vector<8x64xf32>, vector<8x64xf32>, vector<8x8xf32> -> vector<8x8xf32>
    %24 = vector.extract_strided_slice %23 {offsets = [0, 0], sizes = [1, 8], strides = [1, 1]} : vector<8x8xf32> to vector<1x8xf32>
    %c3 = arith.constant 3 : index
    %c0_13 = arith.constant 0 : index
    %25 = vector.load %arg4[%c3, %c0_13] : memref<4x64xf32, #tpu.memory_space<vmem>>, vector<1x1xf32>
    %26 = vector.broadcast %25 : vector<1x1xf32> to vector<1x8xf32>
    %27 = arith.addf %24, %26 : vector<1x8xf32>
    %c0_14 = arith.constant 0 : index
    %c0_15 = arith.constant 0 : index
    %28 = vector.load %arg5[%c0_14, %c0_15] : memref<1x8xf32, #tpu.memory_space<vmem>>, vector<1x8xf32>
    tpu.vector_store %arg5[%c0_14, %c0_15], %27 {strides = array<i32>} : memref<1x8xf32, #tpu.memory_space<vmem>>, vector<1x8xf32>,
    return
  }
  func.func @transform_0(%arg0: i32) -> (i32, i32) {
    %c0_i32 = arith.constant 0 : i32
    %c0_i32_0 = arith.constant 0 : i32
    return %arg0, %c0_i32 : i32, i32
  }
  func.func @transform_1(%arg0: i32) -> (i32, i32) {
    %c0_i32 = arith.constant 0 : i32
    %c0_i32_0 = arith.constant 0 : i32
    %c0_i32_1 = arith.constant 0 : i32
    return %c0_i32, %c0_i32_0 : i32, i32
  }
  func.func @transform_2(%arg0: i32) -> (i32, i32) {
    %c0_i32 = arith.constant 0 : i32
    %c0_i32_0 = arith.constant 0 : i32
    %c0_i32_1 = arith.constant 0 : i32
    return %c0_i32, %c0_i32_0 : i32, i32
  }
  func.func @transform_3(%arg0: i32) -> (i32, i32) {
    %c0_i32 = arith.constant 0 : i32
    %c0_i32_0 = arith.constant 0 : i32
    %c0_i32_1 = arith.constant 0 : i32
    return %c0_i32, %c0_i32_0 : i32, i32
  }
  func.func @transform_4(%arg0: i32) -> (i32, i32) {
    %c0_i32 = arith.constant 0 : i32
    %c0_i32_0 = arith.constant 0 : i32
    return %c0_i32, %arg0 : i32, i32
  }
}

</mosaic_0001>

<llo_original>
// kernel: feature_selection.1
$region0: #{feature_selection.1}
  #allocation0 [shape = 'u32[]', space=smem, size = 0x4, offset = 0x4, fixed_abs, tag = 'smem constant byte address 0x4 - core index']
  #allocation1 [shape = 'u32[72,128]{1,0:T(1,128)}', space=vmem, size = 0x9000, scoped, tag = 'internal scratch']
  %s0 = inlined_call_operand.hbm [shape: f32[8,32], index: 0, kind: input, shape index: {}]
  %s1 = inlined_call_operand.hbm [shape: bf16[32,32], index: 1, kind: input, shape index: {}]
  %s2 = inlined_call_operand.hbm [shape: f32[32,64], index: 2, kind: input, shape index: {}]
  %s3 = inlined_call_operand.hbm [shape: f32[4,64], index: 3, kind: input, shape index: {}]
  %s4 = inlined_call_operand.hbm [shape: f32[1,8], index: 4, kind: output, shape index: {}]
  %s5 = sld [smem:[#allocation0]]
  $region42: #{feature_selection.1} parent=0
    _
  %s7 = ssub.s32 1, %s5
  %s8 = scalar_select 0, %s7, %s5
  $region1: #{feature_selection.1} parent=0
    #allocation2 [shape = 'u8[4096]{0}', space=vmem, size = 0x1000, scoped, tag = 'input window, operand 0, single buffered']
    #allocation3 [shape = 's32[1]{0}', space=sflag, size = 0x4, scoped, tag = 'scoped memory for feature_selection.1']
    #allocation4 [shape = 's32[1]{0}', space=sflag, size = 0x4, scoped, tag = 'scoped memory for feature_selection.1']
    #allocation5 [shape = 'u8[8192]{0}', space=vmem, size = 0x2000, scoped, tag = 'input window, operand 1, single buffered']
    #allocation6 [shape = 's32[1]{0}', space=sflag, size = 0x4, scoped, tag = 'scoped memory for feature_selection.1']
    #allocation7 [shape = 'u8[16384]{0}', space=vmem, size = 0x4000, scoped, tag = 'input window, operand 2, single buffered']
    #allocation8 [shape = 'u8[2048]{0}', space=vmem, size = 0x800, scoped, tag = 'input window, operand 3, single buffered']
    #allocation9 [shape = 's32[1]{0}', space=sflag, size = 0x4, scoped, tag = 'scoped memory for feature_selection.1']
    #allocation10 [shape = 'u8[512]{0}', space=vmem, size = 0x400, scoped, tag = 'output window, operand 0, single buffered']
    %9 = vsyncpa [#allocation3], 0
    %10 = vsyncpa [#allocation6], 0
    %11 = vsyncpa [#allocation9], 0
    %12 = vsyncpa [#allocation4], 0
    // Predicated region
    $region2: #{feature_selection.1} parent=1 // pred_check
      _
    $region3: #{feature_selection.1} parent=1 // pred_check_branch
      %14 = sbr.rel (0) target = $region5
    $region4: #{feature_selection.1} parent=1 // pred_region
      %16 = vsyncadd [#allocation3], 0
      %s18 = sshll.u32 %s0, 4
      %s19 = int_to_ptr.hbm [resolvable:$true] %s18
      %s20 = sshll.u32 [#allocation2], 4
      %s21 = int_to_ptr.vmem [resolvable:$true] %s20
      %23 = dma.hbm_to_vmem [thread:$0]  %s19, 128, %s21, [#allocation3]
    $region5: #{feature_selection.1} parent=1 // pred_fallthru
      _
    // Predicated region
    $region6: #{feature_selection.1} parent=1 // pred_check
      _
    $region7: #{feature_selection.1} parent=1 // pred_check_branch
      %25 = sbr.rel (0) target = $region9
    $region8: #{feature_selection.1} parent=1 // pred_region
      %27 = vsyncadd [#allocation6], 0
      %s28 = sshll.u32 %s1, 4
      %s29 = int_to_ptr.hbm [resolvable:$true] %s28
      %s30 = sshll.u32 [#allocation5], 4
      %s31 = int_to_ptr.vmem [resolvable:$true] %s30
      %36 = dma.hbm_to_vmem [thread:$0]  %s29, 256, %s31, [#allocation6], 64, 64, 4
    $region9: #{feature_selection.1} parent=1 // pred_fallthru
      _
    // Predicated region
    $region10: #{feature_selection.1} parent=1 // pred_check
      _
    $region11: #{feature_selection.1} parent=1 // pred_check_branch
      %38 = sbr.rel (0) target = $region13
    $region12: #{feature_selection.1} parent=1 // pred_region
      %40 = vsyncadd [#allocation6], 0
      %s41 = sshll.u32 %s2, 4
      %s42 = int_to_ptr.hbm [resolvable:$true] %s41
      %s43 = sshll.u32 [#allocation7], 4
      %s44 = int_to_ptr.vmem [resolvable:$true] %s43
      %49 = dma.hbm_to_vmem [thread:$0]  %s42, 512, %s44, [#allocation6], 128, 128, 8
    $region13: #{feature_selection.1} parent=1 // pred_fallthru
      _
    // Predicated region
    $region14: #{feature_selection.1} parent=1 // pred_check
      _
    $region15: #{feature_selection.1} parent=1 // pred_check_branch
      %51 = sbr.rel (0) target = $region17
    $region16: #{feature_selection.1} parent=1 // pred_region
      %53 = vsyncadd [#allocation9], 0
      %s55 = sshll.u32 %s3, 4
      %s56 = int_to_ptr.hbm [resolvable:$true] %s55
      %s57 = sshll.u32 [#allocation8], 4
      %s58 = int_to_ptr.vmem [resolvable:$true] %s57
      %60 = dma.hbm_to_vmem [thread:$0]  %s56, 64, %s58, [#allocation9]
    $region17: #{feature_selection.1} parent=1 // pred_fallthru
      _
    // Predicated region
    $region18: #{feature_selection.1} parent=1 // pred_check
      _
    $region19: #{feature_selection.1} parent=1 // pred_check_branch
      %62 = sbr.rel (0) target = $region21
    $region20: #{feature_selection.1} parent=1 // pred_region
      %64 = dma.done [#allocation3], 128
    $region21: #{feature_selection.1} parent=1 // pred_fallthru
      _
    // Predicated region
    $region22: #{feature_selection.1} parent=1 // pred_check
      _
    $region23: #{feature_selection.1} parent=1 // pred_check_branch
      %66 = sbr.rel (0) target = $region25
    $region24: #{feature_selection.1} parent=1 // pred_region
      %68 = dma.done [#allocation6], 256
    $region25: #{feature_selection.1} parent=1 // pred_fallthru
      _
    // Predicated region
    $region26: #{feature_selection.1} parent=1 // pred_check
      _
    $region27: #{feature_selection.1} parent=1 // pred_check_branch
      %70 = sbr.rel (0) target = $region29
    $region28: #{feature_selection.1} parent=1 // pred_region
      %72 = dma.done [#allocation6], 512
    $region29: #{feature_selection.1} parent=1 // pred_fallthru
      _
    // Predicated region
    $region30: #{feature_selection.1} parent=1 // pred_check
      _
    $region31: #{feature_selection.1} parent=1 // pred_check_branch
      %74 = sbr.rel (0) target = $region33
    $region32: #{feature_selection.1} parent=1 // pred_region
      %76 = dma.done [#allocation9], 64
    $region33: #{feature_selection.1} parent=1 // pred_fallthru
      _
    %v78 = vld [vmem:[#allocation2] sm:$0xff]
    %v79 = vpack.c.bf16 %v78, %v78
    %v80 = vld [vmem:[#allocation5] sm:$0xf]
    %v81 = vld [vmem:[#allocation5 + $0x4] sm:$0xf]
    %v82 = vld [vmem:[#allocation5 + $0x8] sm:$0xf]
    %v83 = vld [vmem:[#allocation5 + $0xc] sm:$0xf]
    %v84 = vld [vmem:[#allocation8] sm:$0x1]
    %v85 = vperm.slane %v84, 0
    %v90 = vunpack.c.l.b16 %v80
    %v91 = vunpack.c.l.b16 %v81
    %v92 = vunpack.c.l.b16 %v82
    %v93 = vunpack.c.l.b16 %v83
    %v94 = vpack.c.b16 %v91, %v90
    %v95 = vpack.c.b16 %v93, %v92
    %vm98 = vcmask 261120
    %v100 = vsel %vm98, %v79, 0
    %102 = vmatpush.bf16.msra.mxu0 0
    %103 = vmatpush.bf16.msra.mxu0 0
    %104 = vmatpush.bf16.msra.mxu0 0
    %105 = vmatpush.bf16.msra.mxu0 0
    %106 = vmatpush.bf16.msra.mxu0 0
    %107 = vmatpush.bf16.msra.mxu0 0
    %108 = vmatpush.bf16.msra.mxu0 %v95
    %109 = vmatpush.bf16.msra.mxu0 %v94
    %110 = vmatmul.bf16.gmra.mxu0 %v100
    %v111 = vpop.f32.mrf.mxu0
    %v112 = vadd.f32 %v85, %v111
    %v113 = vpop.f32.mrf.mxu0
    %114 = vdwg.mxu0
    %v115 = vxor.u32 %v112, 2147483648
    %v116 = vmul.f32 %v115, 1.442695
    %v117 = vpow.pop %v116
    %v118 = vadd.f32 %v117, 1.0
    %v119 = vrcp.pop %v118
    %v120 = vmul.f32 %v118, %v119
    %v121 = vsub.f32 1.0, %v120
    %v122 = vmul.f32 %v119, %v121
    %v123 = vadd.f32 %v119, %v122
    %vm124 = vweird.f32 %v118
    %vm125 = vweird.f32 %v119
    %vm126 = vmor %vm124, %vm125
    %v127 = vsel %vm126, %v119, %v123
    %v128 = vand.u32 2147483647, %v118
    %vm129 = vcmp.eq.f32.partialorder %v128, 8.507059e+37
    %v130 = vand.u32 %v118, 2147483648
    %v131 = vor.u32 1.1754944e-38, %v130
    %v132 = vsel %vm129, %v131, %v127
    %v133 = vmul.f32 1.0, %v132
    %v134 = vmul.f32 %v112, %v133
    %v135 = vld [vmem:[#allocation7] sm:$0xff]
    %v136 = vld [vmem:[#allocation7 + $0x8] sm:$0xff]
    %v137 = vld [vmem:[#allocation7 + $0x10] sm:$0xff]
    %v138 = vld [vmem:[#allocation7 + $0x18] sm:$0xff]
    %v139 = vld [vmem:[#allocation8 + $0x1] sm:$0x1]
    %v140 = vperm.slane %v139, 0
    %v142 = vsel %vm98, %v134, 0
    %144 = vmatpush.msra.mxu0 0.0
    %145 = vmatpush.msra.mxu0 0.0
    %146 = vmatpush.msra.mxu0 0.0
    %147 = vmatpush.msra.mxu0 0.0
    %148 = vmatpush.msra.mxu0 0.0
    %149 = vmatpush.msra.mxu0 0.0
    %150 = vmatpush.msra.mxu0 0.0
    %151 = vmatpush.msra.mxu0 0.0
    %152 = vmatpush.msra.mxu0 0.0
    %153 = vmatpush.msra.mxu0 0.0
    %154 = vmatpush.msra.mxu0 0.0
    %155 = vmatpush.msra.mxu0 0.0
    %156 = vmatpush.msra.mxu0 %v138
    %157 = vmatpush.msra.mxu0 %v137
    %158 = vmatpush.msra.mxu0 %v136
    %159 = vmatpush.msra.mxu0 %v135
    %160 = vmatmul.f32.gmra.mxu0 %v142
    %v161 = vpop.f32.mrf.mxu0
    %v162 = vadd.f32 %v140, %v161
    %163 = vdwg.mxu0
    %v164 = vmax.f32 %v162, 0.0
    %v165 = vld [vmem:[#allocation8 + $0x2] sm:$0x1]
    %v166 = vperm.slane %v165, 0
    %vm167 = vcmask 523264
    %v169 = vsel %vm167, %v166, 0
    %v172 = vsel %vm167, %v164, 0
    %174 = vmatpush.xpose.msra.mxu0 0.0
    %175 = vmatpush.xpose.msra.mxu0 0.0
    %176 = vmatpush.xpose.msra.mxu0 0.0
    %177 = vmatpush.xpose.msra.mxu0 0.0
    %178 = vmatpush.xpose.msra.mxu0 0.0
    %179 = vmatpush.xpose.msra.mxu0 0.0
    %180 = vmatpush.xpose.msra.mxu0 0.0
    %181 = vmatpush.xpose.msra.mxu0 0.0
    %182 = vmatpush.xpose.msra.mxu0 0.0
    %183 = vmatpush.xpose.msra.mxu0 0.0
    %184 = vmatpush.xpose.msra.mxu0 0.0
    %185 = vmatpush.xpose.msra.mxu0 0.0
    %186 = vmatpush.xpose.msra.mxu0 0.0
    %187 = vmatpush.xpose.msra.mxu0 0.0
    %188 = vmatpush.xpose.msra.mxu0 0.0
    %189 = vmatpush.xpose.msra.mxu0 %v172
    %190 = vmatmul.f32.gmra.mxu0 %v169
    %v191 = vpop.f32.mrf.mxu0
    %v192 = vadd.f32 0.0, %v191
    %193 = vdwg.mxu0
    %v194 = vld [vmem:[#allocation8 + $0x3] sm:$0x1]
    %196 = vset.pattern.permute.xlu0 0
    %197 = vperm.xlu0 %196, %v194
    %v198 = vpop.permute.xlu0 %197
    %v200 = vadd.f32 %v192, %v198
    %vm201 = vcmask 57344
    %202 = vst.msk [vmem:[#allocation10] sm:$0x1] %vm201, %v200
    // Predicated region
    $region34: #{feature_selection.1} parent=1 // pred_check
      _
    $region35: #{feature_selection.1} parent=1 // pred_check_branch
      %204 = sbr.rel (0) target = $region37
    $region36: #{feature_selection.1} parent=1 // pred_region
      %206 = vsyncadd [#allocation4], 0
      %s208 = sshll.u32 [#allocation10], 4
      %s209 = int_to_ptr.vmem [resolvable:$true] %s208
      %s210 = sshll.u32 %s4, 4
      %s211 = int_to_ptr.hbm [resolvable:$true] %s210
      %213 = dma.vmem_to_hbm [thread:$0]  %s209, 16, %s211, [#allocation4]
    $region37: #{feature_selection.1} parent=1 // pred_fallthru
      _
    // Predicated region
    $region38: #{feature_selection.1} parent=1 // pred_check
      _
    $region39: #{feature_selection.1} parent=1 // pred_check_branch
      %215 = sbr.rel (0) target = $region41
    $region40: #{feature_selection.1} parent=1 // pred_region
      %217 = dma.done [#allocation4], 16
    $region41: #{feature_selection.1} parent=1 // pred_fallthru
      _
    %218 = vsyncpa [#allocation3], 1
    %219 = vsyncpa [#allocation6], 1
    %220 = vsyncpa [#allocation9], 1
    %221 = vsyncpa [#allocation4], 1

</llo_original>
